<compile_context>
chip_gen: v7x
topology: tpu7x:2x2x1
jax: 0.10.0
libtpu: 0.0.40
codegen_flags: <defaults>
</compile_context>

<pallas_src>
import functools

import jax
import jax.numpy as jnp
from jax.experimental import pallas as pl
from jax.experimental.pallas import tpu as pltpu

# ---------------- small deterministic problem configuration ----------------
B = 8              # test features on this rank
D = 64             # feature dim
NTRAIN = 128       # train features on this rank (lane-aligned)
NUM_CLASSES = 128  # lane-aligned -> unmasked 128-lane output stores
NB_KNN = (1, 3, 5)
MAX_K = max(NB_KNN)
TEMPERATURE = 0.07


def _knn_kernel(feat_ref, train_t_ref, labels_ref,
                probas_ref, topk_sims_ref, topk_labels_ref,
                *, nb_knn, inv_temperature):
    """Whole-batch kNN classification in a single grid step.

    feat_ref:        (B, D)       bf16 test features for this rank
    train_t_ref:     (D, NTRAIN)  bf16 == module's train_features_rank_T
    labels_ref:      (1, NTRAIN)  f32  candidate train labels (integer-valued)
    probas_ref:      (NK, B, C)   f32  probas_for_k stacked in ascending-k order
    topk_sims_ref:   (B, MAX_K)   f32  top-k similarities, descending
    topk_labels_ref: (B, MAX_K)   i32  labels of the top-k neighbors
    """
    b, _ = feat_ref.shape
    ntrain = train_t_ref.shape[1]
    num_classes = probas_ref.shape[2]
    max_k = topk_sims_ref.shape[1]

    # similarity = features_rank @ train_features_rank_T (bf16 operands, f32 MXU acc)
    sim = jnp.dot(feat_ref[...], train_t_ref[...],
                  preferred_element_type=jnp.float32)                 # (B, NTRAIN) f32

    labels = jnp.broadcast_to(labels_ref[...], (b, ntrain))          # (B, NTRAIN) f32
    lane_iota = jax.lax.broadcasted_iota(
        jnp.int32, (b, ntrain), 1).astype(jnp.float32)

    # Pack (lane index, label) into one exact f32 code so the per-iteration
    # "first argmax + label gather" is a SINGLE lane-min reduce.
    # max value = NTRAIN * C = 16384 << 2^24, exact in f32.
    packed = lane_iota * float(num_classes) + labels                 # (B, NTRAIN)
    big = float(ntrain * num_classes)

    col_iota = jax.lax.broadcasted_iota(jnp.int32, (b, max_k), 1)    # (B, MAX_K)

    # --- topk(max_k, largest=True, sorted=True) + label gather -----------------
    # max_k is tiny: iterate row-max -> packed-min decode -> mask out.
    # Per iteration: 2 XLU reductions (max, min); NO stores inside the loop.
    vals_mat = jnp.zeros((b, max_k), jnp.float32)
    labs_mat = jnp.zeros((b, max_k), jnp.float32)
    labs_list = []                                                    # (B,1) per step
    work = sim
    for i in range(max_k):
        m = jnp.max(work, axis=-1, keepdims=True)                     # (B, 1)  XLU #1
        is_max = work == m
        pmin = jnp.min(jnp.where(is_max, packed, big),
                       axis=-1, keepdims=True)                        # (B, 1)  XLU #2
        idx = jnp.floor(pmin / float(num_classes))                    # exact (C = 2^7)
        lab = pmin - idx * float(num_classes)                         # (B, 1) label
        sel = lane_iota == idx                                        # one-hot row mask
        work = jnp.where(sel, -jnp.inf, work)

        col_is_i = col_iota == i
        vals_mat = jnp.where(col_is_i, m, vals_mat)                   # column select
        labs_mat = jnp.where(col_is_i, lab, labs_mat)
        labs_list.append(lab)
        if i == 0:
            m0 = m                                                    # row max (desc order)

    # single stores for the (B, MAX_K) outputs (was 2*max_k masked lane-1 stores)
    topk_sims_ref[...] = vals_mat
    topk_labels_ref[...] = labs_mat.astype(jnp.int32)

    # --- softmax(topk_sims / T): one EUP push over the whole (B, MAX_K) tile ---
    exps = jnp.exp((vals_mat - m0) * inv_temperature)                 # (B, MAX_K)
    denom = jnp.sum(exps, axis=-1, keepdims=True)                     # (B, 1)
    inv_denom = pl.reciprocal(denom, approx=True)                     # EUP slot, ~free
    weights = exps * inv_denom                                        # (B, MAX_K)

    # --- weighted one-hot vote, cumulative over neighbors; emit at each k ------
    class_iota = jax.lax.broadcasted_iota(
        jnp.int32, (b, num_classes), 1).astype(jnp.float32)
    acc = jnp.zeros((b, num_classes), jnp.float32)
    out_slot = 0
    for i in range(max_k):
        w = weights[:, i:i + 1]                                       # (B, 1) static slice
        acc = acc + w * (class_iota == labs_list[i]).astype(jnp.float32)
        if (i + 1) in nb_knn:
            probas_ref[out_slot] = acc                                # full 128-lane store
            out_slot += 1


def knn_forward(features_rank, train_features, train_labels, *,
                nb_knn=NB_KNN, temperature=TEMPERATURE,
                num_classes=NUM_CLASSES, norm_mode="none"):
    """JAX/Pallas equivalent of KnnModule.forward (single-rank path).

    Returns (probas_for_k dict, topk_sims, neighbors_labels).
    """
    nb_knn = tuple(sorted(int(k) for k in nb_knn))
    max_k = nb_knn[-1]
    assert all(1 <= k <= max_k for k in nb_knn)

    features_rank = features_rank.astype(jnp.float32)
    train_features = train_features.astype(jnp.float32)

    if norm_mode == "all":
        mean = train_features.mean(axis=0)
        std = train_features.std(axis=0)
        train_features = (train_features - mean) / std
        features_rank = (features_rank - mean) / std
    elif norm_mode == "none":
        pass
    else:
        # TODO(synk): 'batchwise' L2 normalization not implemented in this demo.
        raise NotImplementedError(f"norm_mode={norm_mode}")

    # bf16 matmul operands (MXU-native; halves DMA bytes), f32 accumulate in-kernel.
    feat_bf16 = features_rank.astype(jnp.bfloat16)
    train_t_bf16 = train_features.T.astype(jnp.bfloat16)           # train_features_rank_T
    labels_row = train_labels.reshape(1, -1).astype(jnp.float32)   # candidates (1, Ntrain)

    b, d = feat_bf16.shape
    ntrain = train_t_bf16.shape[1]
    nk = len(nb_knn)

    kernel = functools.partial(_knn_kernel, nb_knn=nb_knn,
                               inv_temperature=float(1.0 / temperature))

    probas, topk_sims, topk_labels = pl.pallas_call(
        kernel,
        out_shape=(
            jax.ShapeDtypeStruct((nk, b, num_classes), jnp.float32),
            jax.ShapeDtypeStruct((b, max_k), jnp.float32),
            jax.ShapeDtypeStruct((b, max_k), jnp.int32),
        ),
        grid=(1,),                                 # whole batch in ONE kernel step
        in_specs=[
            pl.BlockSpec((b, d), lambda i: (0, 0)),
            pl.BlockSpec((d, ntrain), lambda i: (0, 0)),
            pl.BlockSpec((1, ntrain), lambda i: (0, 0)),
        ],
        out_specs=(
            pl.BlockSpec((nk, b, num_classes), lambda i: (0, 0, 0)),
            pl.BlockSpec((b, max_k), lambda i: (0, 0)),
            pl.BlockSpec((b, max_k), lambda i: (0, 0)),
        ),
        compiler_params=pltpu.CompilerParams(
            dimension_semantics=("arbitrary",)),
    )(feat_bf16, train_t_bf16, labels_row)

    probas_for_k = {k: probas[i] for i, k in enumerate(nb_knn)}
    return probas_for_k, topk_sims, topk_labels


# ------------------------------------ main ---------------------------------------
if __name__ == "__main__":
    key = jax.random.PRNGKey(0)
    k1, k2, k3 = jax.random.split(key, 3)

    train_features = jax.random.normal(k1, (NTRAIN, D), dtype=jnp.float32)
    train_labels = jax.random.randint(k2, (NTRAIN,), 0, NUM_CLASSES, dtype=jnp.int32)
    features_rank = jax.random.normal(k3, (B, D), dtype=jnp.float32)

    probas_for_k, topk_sims, topk_labels = knn_forward(
        features_rank, train_features, train_labels,
        nb_knn=NB_KNN, temperature=TEMPERATURE,
        num_classes=NUM_CLASSES, norm_mode="none")
    jax.block_until_ready((probas_for_k, topk_sims, topk_labels))

    # --- sanity checks ---
    assert topk_sims.shape == (B, MAX_K) and topk_labels.shape == (B, MAX_K)
    for k in NB_KNN:
        assert probas_for_k[k].shape == (B, NUM_CLASSES)
        assert bool(jnp.all(jnp.isfinite(probas_for_k[k])))

    # internal consistency: redo softmax / one-hot vote from the kernel's own top-k outputs
    w_ref = jax.nn.softmax(topk_sims / TEMPERATURE, axis=1)
    onehot_ref = jax.nn.one_hot(topk_labels, NUM_CLASSES, dtype=jnp.float32)
    for i, k in enumerate(sorted(NB_KNN)):
        ref_k = jnp.sum(onehot_ref[:, :k, :] * w_ref[:, :k, None], axis=1)
        assert bool(jnp.allclose(probas_for_k[k], ref_k, atol=1e-2)), f"probas mismatch k={k}"

    # top-k similarity values vs an XLA reference with matching bf16 operands
    # (values only; tie order may differ)
    sim_ref = jnp.dot(features_rank.astype(jnp.bfloat16),
                      train_features.T.astype(jnp.bfloat16),
                      preferred_element_type=jnp.float32)
    ref_vals, _ = jax.lax.top_k(sim_ref, MAX_K)
    assert bool(jnp.allclose(topk_sims, ref_vals, atol=1e-2, rtol=1e-3)), "topk sims mismatch"

    print("KERNEL_OK")
</pallas_src>

<mosaic_0001>
module attributes {stable_mosaic.version = 11 : i64} {
  func.func @_knn_kernel(%arg0: i32, %arg1: memref<8x64xbf16, #tpu.memory_space<vmem>>, %arg2: memref<64x128xbf16, #tpu.memory_space<vmem>>, %arg3: memref<1x128xf32, #tpu.memory_space<vmem>>, %arg4: memref<3x8x128xf32, #tpu.memory_space<vmem>>, %arg5: memref<8x5xf32, #tpu.memory_space<vmem>>, %arg6: memref<8x5xi32, #tpu.memory_space<vmem>>) attributes {dimension_semantics = [#tpu.dimension_semantics<arbitrary>], iteration_bounds = array<i64: 1>, scalar_prefetch = 0 : i64, scratch_operands = 0 : i64, tpu.core_type = #tpu.core_type<tc>, window_params = [{pipeline_mode = #tpu.pipeline_mode<synchronous>, transform_indices = @transform_0, window_bounds = array<i64: 8, 64>}, {pipeline_mode = #tpu.pipeline_mode<synchronous>, transform_indices = @transform_1, window_bounds = array<i64: 64, 128>}, {pipeline_mode = #tpu.pipeline_mode<synchronous>, transform_indices = @transform_2, window_bounds = array<i64: 1, 128>}, {pipeline_mode = #tpu.pipeline_mode<synchronous>, transform_indices = @transform_3, window_bounds = array<i64: 3, 8, 128>}, {pipeline_mode = #tpu.pipeline_mode<synchronous>, transform_indices = @transform_4, window_bounds = array<i64: 8, 5>}, {pipeline_mode = #tpu.pipeline_mode<synchronous>, transform_indices = @transform_5, window_bounds = array<i64: 8, 5>}]} {
    %c0 = arith.constant 0 : index
    %c0_0 = arith.constant 0 : index
    %0 = vector.load %arg1[%c0, %c0_0] : memref<8x64xbf16, #tpu.memory_space<vmem>>, vector<8x64xbf16>
    %c0_1 = arith.constant 0 : index
    %c0_2 = arith.constant 0 : index
    %1 = vector.load %arg2[%c0_1, %c0_2] : memref<64x128xbf16, #tpu.memory_space<vmem>>, vector<64x128xbf16>
    %cst = arith.constant dense<0.000000e+00> : vector<8x128xf32>
    %2 = tpu.matmul %0, %1, %cst {dimension_numbers = #tpu.dot_dimension_numbers<[1], [0], [0], [1], [0, 0, 1, 1], [], []>} : vector<8x64xbf16>, vector<64x128xbf16>, vector<8x128xf32> -> vector<8x128xf32>
    %c0_3 = arith.constant 0 : index
    %c0_4 = arith.constant 0 : index
    %3 = vector.load %arg3[%c0_3, %c0_4] : memref<1x128xf32, #tpu.memory_space<vmem>>, vector<1x128xf32>
    %4 = vector.shape_cast %3 : vector<1x128xf32> to vector<1x128xf32>
    %5 = vector.broadcast %4 : vector<1x128xf32> to vector<8x128xf32>
    %6 = tpu.iota {dimensions = array<i32: 1>} : vector<8x128xi32>
    %7 = arith.sitofp %6 : vector<8x128xi32> to vector<8x128xf32>
    %cst_5 = arith.constant 1.280000e+02 : f32
    %8 = vector.broadcast %cst_5 : f32 to vector<8x128xf32>
    %9 = arith.mulf %7, %8 : vector<8x128xf32>
    %10 = arith.addf %9, %5 : vector<8x128xf32>
    %11 = tpu.iota {dimensions = array<i32: 1>} : vector<8x5xi32>
    %cst_6 = arith.constant 0.000000e+00 : f32
    %12 = vector.broadcast %cst_6 : f32 to vector<8x5xf32>
    %cst_7 = arith.constant 0.000000e+00 : f32
    %13 = vector.broadcast %cst_7 : f32 to vector<8x5xf32>
    %cst_8 = arith.constant dense<0xFF800000> : vector<8xf32>
    %14 = vector.multi_reduction <maximumf>, %2, %cst_8 [1] : vector<8x128xf32> to vector<8xf32>
    %15 = vector.shape_cast %14 : vector<8xf32> to vector<8x1xf32>
    %16 = vector.broadcast %15 : vector<8x1xf32> to vector<8x128xf32>
    %17 = arith.cmpf oeq, %2, %16 : vector<8x128xf32>
    %cst_9 = arith.constant 1.638400e+04 : f32
    %18 = vector.broadcast %cst_9 : f32 to vector<8x128xf32>
    %19 = arith.select %17, %10, %18 : vector<8x128xi1>, vector<8x128xf32>
    %cst_10 = arith.constant dense<0x7F800000> : vector<8xf32>
    %20 = vector.multi_reduction <minimumf>, %19, %cst_10 [1] : vector<8x128xf32> to vector<8xf32>
    %21 = vector.shape_cast %20 : vector<8xf32> to vector<8x1xf32>
    %cst_11 = arith.constant 1.280000e+02 : f32
    %22 = vector.broadcast %cst_11 : f32 to vector<8x1xf32>
    %23 = arith.divf %21, %22 : vector<8x1xf32>
    %24 = math.floor %23 : vector<8x1xf32>
    %cst_12 = arith.constant 1.280000e+02 : f32
    %25 = vector.broadcast %cst_12 : f32 to vector<8x1xf32>
    %26 = arith.mulf %24, %25 : vector<8x1xf32>
    %27 = arith.subf %21, %26 : vector<8x1xf32>
    %28 = vector.broadcast %24 : vector<8x1xf32> to vector<8x128xf32>
    %29 = arith.cmpf oeq, %7, %28 : vector<8x128xf32>
    %cst_13 = arith.constant 0xFF800000 : f32
    %30 = vector.broadcast %cst_13 : f32 to vector<8x128xf32>
    %31 = arith.select %29, %30, %2 : vector<8x128xi1>, vector<8x128xf32>
    %c0_i32 = arith.constant 0 : i32
    %32 = vector.broadcast %c0_i32 : i32 to vector<8x5xi32>
    %33 = arith.cmpi eq, %11, %32 : vector<8x5xi32>
    %34 = vector.shape_cast %15 : vector<8x1xf32> to vector<8x1xf32>
    %35 = vector.broadcast %34 : vector<8x1xf32> to vector<8x5xf32>
    %36 = arith.select %33, %35, %12 : vector<8x5xi1>, vector<8x5xf32>
    %37 = vector.shape_cast %27 : vector<8x1xf32> to vector<8x1xf32>
    %38 = vector.broadcast %37 : vector<8x1xf32> to vector<8x5xf32>
    %39 = arith.select %33, %38, %13 : vector<8x5xi1>, vector<8x5xf32>
    %cst_14 = arith.constant dense<0xFF800000> : vector<8xf32>
    %40 = vector.multi_reduction <maximumf>, %31, %cst_14 [1] : vector<8x128xf32> to vector<8xf32>
    %41 = vector.shape_cast %40 : vector<8xf32> to vector<8x1xf32>
    %42 = vector.broadcast %41 : vector<8x1xf32> to vector<8x128xf32>
    %43 = arith.cmpf oeq, %31, %42 : vector<8x128xf32>
    %cst_15 = arith.constant 1.638400e+04 : f32
    %44 = vector.broadcast %cst_15 : f32 to vector<8x128xf32>
    %45 = arith.select %43, %10, %44 : vector<8x128xi1>, vector<8x128xf32>
    %cst_16 = arith.constant dense<0x7F800000> : vector<8xf32>
    %46 = vector.multi_reduction <minimumf>, %45, %cst_16 [1] : vector<8x128xf32> to vector<8xf32>
    %47 = vector.shape_cast %46 : vector<8xf32> to vector<8x1xf32>
    %cst_17 = arith.constant 1.280000e+02 : f32
    %48 = vector.broadcast %cst_17 : f32 to vector<8x1xf32>
    %49 = arith.divf %47, %48 : vector<8x1xf32>
    %50 = math.floor %49 : vector<8x1xf32>
    %cst_18 = arith.constant 1.280000e+02 : f32
    %51 = vector.broadcast %cst_18 : f32 to vector<8x1xf32>
    %52 = arith.mulf %50, %51 : vector<8x1xf32>
    %53 = arith.subf %47, %52 : vector<8x1xf32>
    %54 = vector.broadcast %50 : vector<8x1xf32> to vector<8x128xf32>
    %55 = arith.cmpf oeq, %7, %54 : vector<8x128xf32>
    %cst_19 = arith.constant 0xFF800000 : f32
    %56 = vector.broadcast %cst_19 : f32 to vector<8x128xf32>
    %57 = arith.select %55, %56, %31 : vector<8x128xi1>, vector<8x128xf32>
    %c1_i32 = arith.constant 1 : i32
    %58 = vector.broadcast %c1_i32 : i32 to vector<8x5xi32>
    %59 = arith.cmpi eq, %11, %58 : vector<8x5xi32>
    %60 = vector.shape_cast %41 : vector<8x1xf32> to vector<8x1xf32>
    %61 = vector.broadcast %60 : vector<8x1xf32> to vector<8x5xf32>
    %62 = arith.select %59, %61, %36 : vector<8x5xi1>, vector<8x5xf32>
    %63 = vector.shape_cast %53 : vector<8x1xf32> to vector<8x1xf32>
    %64 = vector.broadcast %63 : vector<8x1xf32> to vector<8x5xf32>
    %65 = arith.select %59, %64, %39 : vector<8x5xi1>, vector<8x5xf32>
    %cst_20 = arith.constant dense<0xFF800000> : vector<8xf32>
    %66 = vector.multi_reduction <maximumf>, %57, %cst_20 [1] : vector<8x128xf32> to vector<8xf32>
    %67 = vector.shape_cast %66 : vector<8xf32> to vector<8x1xf32>
    %68 = vector.broadcast %67 : vector<8x1xf32> to vector<8x128xf32>
    %69 = arith.cmpf oeq, %57, %68 : vector<8x128xf32>
    %cst_21 = arith.constant 1.638400e+04 : f32
    %70 = vector.broadcast %cst_21 : f32 to vector<8x128xf32>
    %71 = arith.select %69, %10, %70 : vector<8x128xi1>, vector<8x128xf32>
    %cst_22 = arith.constant dense<0x7F800000> : vector<8xf32>
    %72 = vector.multi_reduction <minimumf>, %71, %cst_22 [1] : vector<8x128xf32> to vector<8xf32>
    %73 = vector.shape_cast %72 : vector<8xf32> to vector<8x1xf32>
    %cst_23 = arith.constant 1.280000e+02 : f32
    %74 = vector.broadcast %cst_23 : f32 to vector<8x1xf32>
    %75 = arith.divf %73, %74 : vector<8x1xf32>
    %76 = math.floor %75 : vector<8x1xf32>
    %cst_24 = arith.constant 1.280000e+02 : f32
    %77 = vector.broadcast %cst_24 : f32 to vector<8x1xf32>
    %78 = arith.mulf %76, %77 : vector<8x1xf32>
    %79 = arith.subf %73, %78 : vector<8x1xf32>
    %80 = vector.broadcast %76 : vector<8x1xf32> to vector<8x128xf32>
    %81 = arith.cmpf oeq, %7, %80 : vector<8x128xf32>
    %cst_25 = arith.constant 0xFF800000 : f32
    %82 = vector.broadcast %cst_25 : f32 to vector<8x128xf32>
    %83 = arith.select %81, %82, %57 : vector<8x128xi1>, vector<8x128xf32>
    %c2_i32 = arith.constant 2 : i32
    %84 = vector.broadcast %c2_i32 : i32 to vector<8x5xi32>
    %85 = arith.cmpi eq, %11, %84 : vector<8x5xi32>
    %86 = vector.shape_cast %67 : vector<8x1xf32> to vector<8x1xf32>
    %87 = vector.broadcast %86 : vector<8x1xf32> to vector<8x5xf32>
    %88 = arith.select %85, %87, %62 : vector<8x5xi1>, vector<8x5xf32>
    %89 = vector.shape_cast %79 : vector<8x1xf32> to vector<8x1xf32>
    %90 = vector.broadcast %89 : vector<8x1xf32> to vector<8x5xf32>
    %91 = arith.select %85, %90, %65 : vector<8x5xi1>, vector<8x5xf32>
    %cst_26 = arith.constant dense<0xFF800000> : vector<8xf32>
    %92 = vector.multi_reduction <maximumf>, %83, %cst_26 [1] : vector<8x128xf32> to vector<8xf32>
    %93 = vector.shape_cast %92 : vector<8xf32> to vector<8x1xf32>
    %94 = vector.broadcast %93 : vector<8x1xf32> to vector<8x128xf32>
    %95 = arith.cmpf oeq, %83, %94 : vector<8x128xf32>
    %cst_27 = arith.constant 1.638400e+04 : f32
    %96 = vector.broadcast %cst_27 : f32 to vector<8x128xf32>
    %97 = arith.select %95, %10, %96 : vector<8x128xi1>, vector<8x128xf32>
    %cst_28 = arith.constant dense<0x7F800000> : vector<8xf32>
    %98 = vector.multi_reduction <minimumf>, %97, %cst_28 [1] : vector<8x128xf32> to vector<8xf32>
    %99 = vector.shape_cast %98 : vector<8xf32> to vector<8x1xf32>
    %cst_29 = arith.constant 1.280000e+02 : f32
    %100 = vector.broadcast %cst_29 : f32 to vector<8x1xf32>
    %101 = arith.divf %99, %100 : vector<8x1xf32>
    %102 = math.floor %101 : vector<8x1xf32>
    %cst_30 = arith.constant 1.280000e+02 : f32
    %103 = vector.broadcast %cst_30 : f32 to vector<8x1xf32>
    %104 = arith.mulf %102, %103 : vector<8x1xf32>
    %105 = arith.subf %99, %104 : vector<8x1xf32>
    %106 = vector.broadcast %102 : vector<8x1xf32> to vector<8x128xf32>
    %107 = arith.cmpf oeq, %7, %106 : vector<8x128xf32>
    %cst_31 = arith.constant 0xFF800000 : f32
    %108 = vector.broadcast %cst_31 : f32 to vector<8x128xf32>
    %109 = arith.select %107, %108, %83 : vector<8x128xi1>, vector<8x128xf32>
    %c3_i32 = arith.constant 3 : i32
    %110 = vector.broadcast %c3_i32 : i32 to vector<8x5xi32>
    %111 = arith.cmpi eq, %11, %110 : vector<8x5xi32>
    %112 = vector.shape_cast %93 : vector<8x1xf32> to vector<8x1xf32>
    %113 = vector.broadcast %112 : vector<8x1xf32> to vector<8x5xf32>
    %114 = arith.select %111, %113, %88 : vector<8x5xi1>, vector<8x5xf32>
    %115 = vector.shape_cast %105 : vector<8x1xf32> to vector<8x1xf32>
    %116 = vector.broadcast %115 : vector<8x1xf32> to vector<8x5xf32>
    %117 = arith.select %111, %116, %91 : vector<8x5xi1>, vector<8x5xf32>
    %cst_32 = arith.constant dense<0xFF800000> : vector<8xf32>
    %118 = vector.multi_reduction <maximumf>, %109, %cst_32 [1] : vector<8x128xf32> to vector<8xf32>
    %119 = vector.shape_cast %118 : vector<8xf32> to vector<8x1xf32>
    %120 = vector.broadcast %119 : vector<8x1xf32> to vector<8x128xf32>
    %121 = arith.cmpf oeq, %109, %120 : vector<8x128xf32>
    %cst_33 = arith.constant 1.638400e+04 : f32
    %122 = vector.broadcast %cst_33 : f32 to vector<8x128xf32>
    %123 = arith.select %121, %10, %122 : vector<8x128xi1>, vector<8x128xf32>
    %cst_34 = arith.constant dense<0x7F800000> : vector<8xf32>
    %124 = vector.multi_reduction <minimumf>, %123, %cst_34 [1] : vector<8x128xf32> to vector<8xf32>
    %125 = vector.shape_cast %124 : vector<8xf32> to vector<8x1xf32>
    %cst_35 = arith.constant 1.280000e+02 : f32
    %126 = vector.broadcast %cst_35 : f32 to vector<8x1xf32>
    %127 = arith.divf %125, %126 : vector<8x1xf32>
    %128 = math.floor %127 : vector<8x1xf32>
    %cst_36 = arith.constant 1.280000e+02 : f32
    %129 = vector.broadcast %cst_36 : f32 to vector<8x1xf32>
    %130 = arith.mulf %128, %129 : vector<8x1xf32>
    %131 = arith.subf %125, %130 : vector<8x1xf32>
    %c4_i32 = arith.constant 4 : i32
    %132 = vector.broadcast %c4_i32 : i32 to vector<8x5xi32>
    %133 = arith.cmpi eq, %11, %132 : vector<8x5xi32>
    %134 = vector.shape_cast %119 : vector<8x1xf32> to vector<8x1xf32>
    %135 = vector.broadcast %134 : vector<8x1xf32> to vector<8x5xf32>
    %136 = arith.select %133, %135, %114 : vector<8x5xi1>, vector<8x5xf32>
    %137 = vector.shape_cast %131 : vector<8x1xf32> to vector<8x1xf32>
    %138 = vector.broadcast %137 : vector<8x1xf32> to vector<8x5xf32>
    %139 = arith.select %133, %138, %117 : vector<8x5xi1>, vector<8x5xf32>
    %c0_37 = arith.constant 0 : index
    %c0_38 = arith.constant 0 : index
    %140 = vector.load %arg5[%c0_37, %c0_38] : memref<8x5xf32, #tpu.memory_space<vmem>>, vector<8x5xf32>
    tpu.vector_store %arg5[%c0_37, %c0_38], %136 {strides = array<i32>} : memref<8x5xf32, #tpu.memory_space<vmem>>, vector<8x5xf32>,
    %141 = arith.fptosi %139 : vector<8x5xf32> to vector<8x5xi32>
    %c0_39 = arith.constant 0 : index
    %c0_40 = arith.constant 0 : index
    %142 = vector.load %arg6[%c0_39, %c0_40] : memref<8x5xi32, #tpu.memory_space<vmem>>, vector<8x5xi32>
    tpu.vector_store %arg6[%c0_39, %c0_40], %141 {strides = array<i32>} : memref<8x5xi32, #tpu.memory_space<vmem>>, vector<8x5xi32>,
    %143 = vector.broadcast %15 : vector<8x1xf32> to vector<8x5xf32>
    %144 = arith.subf %136, %143 : vector<8x5xf32>
    %cst_41 = arith.constant 14.2857141 : f32
    %145 = vector.broadcast %cst_41 : f32 to vector<8x5xf32>
    %146 = arith.mulf %144, %145 : vector<8x5xf32>
    %147 = math.exp %146 : vector<8x5xf32>
    %cst_42 = arith.constant dense<0.000000e+00> : vector<8xf32>
    %148 = vector.multi_reduction <add>, %147, %cst_42 [1] : vector<8x5xf32> to vector<8xf32>
    %149 = vector.shape_cast %148 : vector<8xf32> to vector<8x1xf32>
    %150 = tpu.reciprocal %149 {approx = true} : vector<8x1xf32> -> vector<8x1xf32>
    %151 = vector.broadcast %150 : vector<8x1xf32> to vector<8x5xf32>
    %152 = arith.mulf %147, %151 : vector<8x5xf32>
    %153 = tpu.iota {dimensions = array<i32: 1>} : vector<8x128xi32>
    %154 = arith.sitofp %153 : vector<8x128xi32> to vector<8x128xf32>
    %cst_43 = arith.constant 0.000000e+00 : f32
    %155 = vector.broadcast %cst_43 : f32 to vector<8x128xf32>
    %156 = vector.extract_strided_slice %152 {offsets = [0, 0], sizes = [8, 1], strides = [1, 1]} : vector<8x5xf32> to vector<8x1xf32>
    %157 = vector.broadcast %27 : vector<8x1xf32> to vector<8x128xf32>
    %158 = arith.cmpf oeq, %154, %157 : vector<8x128xf32>
    %159 = arith.extui %158 : vector<8x128xi1> to vector<8x128xi32>
    %160 = arith.sitofp %159 : vector<8x128xi32> to vector<8x128xf32>
    %161 = vector.broadcast %156 : vector<8x1xf32> to vector<8x128xf32>
    %162 = arith.mulf %161, %160 : vector<8x128xf32>
    %163 = arith.addf %155, %162 : vector<8x128xf32>
    %c0_44 = arith.constant 0 : index
    %c0_45 = arith.constant 0 : index
    %c0_46 = arith.constant 0 : index
    %164 = vector.load %arg4[%c0_44, %c0_45, %c0_46] : memref<3x8x128xf32, #tpu.memory_space<vmem>>, vector<1x8x128xf32>
    %165 = vector.shape_cast %164 : vector<1x8x128xf32> to vector<8x128xf32>
    %166 = vector.shape_cast %163 : vector<8x128xf32> to vector<1x8x128xf32>
    tpu.vector_store %arg4[%c0_44, %c0_45, %c0_46], %166 {strides = array<i32>} : memref<3x8x128xf32, #tpu.memory_space<vmem>>, vector<1x8x128xf32>,
    %167 = vector.extract_strided_slice %152 {offsets = [0, 1], sizes = [8, 1], strides = [1, 1]} : vector<8x5xf32> to vector<8x1xf32>
    %168 = vector.broadcast %53 : vector<8x1xf32> to vector<8x128xf32>
    %169 = arith.cmpf oeq, %154, %168 : vector<8x128xf32>
    %170 = arith.extui %169 : vector<8x128xi1> to vector<8x128xi32>
    %171 = arith.sitofp %170 : vector<8x128xi32> to vector<8x128xf32>
    %172 = vector.broadcast %167 : vector<8x1xf32> to vector<8x128xf32>
    %173 = arith.mulf %172, %171 : vector<8x128xf32>
    %174 = arith.addf %163, %173 : vector<8x128xf32>
    %175 = vector.extract_strided_slice %152 {offsets = [0, 2], sizes = [8, 1], strides = [1, 1]} : vector<8x5xf32> to vector<8x1xf32>
    %176 = vector.broadcast %79 : vector<8x1xf32> to vector<8x128xf32>
    %177 = arith.cmpf oeq, %154, %176 : vector<8x128xf32>
    %178 = arith.extui %177 : vector<8x128xi1> to vector<8x128xi32>
    %179 = arith.sitofp %178 : vector<8x128xi32> to vector<8x128xf32>
    %180 = vector.broadcast %175 : vector<8x1xf32> to vector<8x128xf32>
    %181 = arith.mulf %180, %179 : vector<8x128xf32>
    %182 = arith.addf %174, %181 : vector<8x128xf32>
    %c1 = arith.constant 1 : index
    %c0_47 = arith.constant 0 : index
    %c0_48 = arith.constant 0 : index
    %183 = vector.load %arg4[%c1, %c0_47, %c0_48] : memref<3x8x128xf32, #tpu.memory_space<vmem>>, vector<1x8x128xf32>
    %184 = vector.shape_cast %183 : vector<1x8x128xf32> to vector<8x128xf32>
    %185 = vector.shape_cast %182 : vector<8x128xf32> to vector<1x8x128xf32>
    tpu.vector_store %arg4[%c1, %c0_47, %c0_48], %185 {strides = array<i32>} : memref<3x8x128xf32, #tpu.memory_space<vmem>>, vector<1x8x128xf32>,
    %186 = vector.extract_strided_slice %152 {offsets = [0, 3], sizes = [8, 1], strides = [1, 1]} : vector<8x5xf32> to vector<8x1xf32>
    %187 = vector.broadcast %105 : vector<8x1xf32> to vector<8x128xf32>
    %188 = arith.cmpf oeq, %154, %187 : vector<8x128xf32>
    %189 = arith.extui %188 : vector<8x128xi1> to vector<8x128xi32>
    %190 = arith.sitofp %189 : vector<8x128xi32> to vector<8x128xf32>
    %191 = vector.broadcast %186 : vector<8x1xf32> to vector<8x128xf32>
    %192 = arith.mulf %191, %190 : vector<8x128xf32>
    %193 = arith.addf %182, %192 : vector<8x128xf32>
    %194 = vector.extract_strided_slice %152 {offsets = [0, 4], sizes = [8, 1], strides = [1, 1]} : vector<8x5xf32> to vector<8x1xf32>
    %195 = vector.broadcast %131 : vector<8x1xf32> to vector<8x128xf32>
    %196 = arith.cmpf oeq, %154, %195 : vector<8x128xf32>
    %197 = arith.extui %196 : vector<8x128xi1> to vector<8x128xi32>
    %198 = arith.sitofp %197 : vector<8x128xi32> to vector<8x128xf32>
    %199 = vector.broadcast %194 : vector<8x1xf32> to vector<8x128xf32>
    %200 = arith.mulf %199, %198 : vector<8x128xf32>
    %201 = arith.addf %193, %200 : vector<8x128xf32>
    %c2 = arith.constant 2 : index
    %c0_49 = arith.constant 0 : index
    %c0_50 = arith.constant 0 : index
    %202 = vector.load %arg4[%c2, %c0_49, %c0_50] : memref<3x8x128xf32, #tpu.memory_space<vmem>>, vector<1x8x128xf32>
    %203 = vector.shape_cast %202 : vector<1x8x128xf32> to vector<8x128xf32>
    %204 = vector.shape_cast %201 : vector<8x128xf32> to vector<1x8x128xf32>
    tpu.vector_store %arg4[%c2, %c0_49, %c0_50], %204 {strides = array<i32>} : memref<3x8x128xf32, #tpu.memory_space<vmem>>, vector<1x8x128xf32>,
    return
  }
  func.func @transform_0(%arg0: i32) -> (i32, i32) {
    %c0_i32 = arith.constant 0 : i32
    %c0_i32_0 = arith.constant 0 : i32
    %c0_i32_1 = arith.constant 0 : i32
    return %c0_i32, %c0_i32_0 : i32, i32
  }
  func.func @transform_1(%arg0: i32) -> (i32, i32) {
    %c0_i32 = arith.constant 0 : i32
    %c0_i32_0 = arith.constant 0 : i32
    %c0_i32_1 = arith.constant 0 : i32
    return %c0_i32, %c0_i32_0 : i32, i32
  }
  func.func @transform_2(%arg0: i32) -> (i32, i32) {
    %c0_i32 = arith.constant 0 : i32
    %c0_i32_0 = arith.constant 0 : i32
    %c0_i32_1 = arith.constant 0 : i32
    return %c0_i32, %c0_i32_0 : i32, i32
  }
  func.func @transform_3(%arg0: i32) -> (i32, i32, i32) {
    %c0_i32 = arith.constant 0 : i32
    %c0_i32_0 = arith.constant 0 : i32
    %c0_i32_1 = arith.constant 0 : i32
    %c0_i32_2 = arith.constant 0 : i32
    return %c0_i32, %c0_i32_0, %c0_i32_1 : i32, i32, i32
  }
  func.func @transform_4(%arg0: i32) -> (i32, i32) {
    %c0_i32 = arith.constant 0 : i32
    %c0_i32_0 = arith.constant 0 : i32
    %c0_i32_1 = arith.constant 0 : i32
    return %c0_i32, %c0_i32_0 : i32, i32
  }
  func.func @transform_5(%arg0: i32) -> (i32, i32) {
    %c0_i32 = arith.constant 0 : i32
    %c0_i32_0 = arith.constant 0 : i32
    %c0_i32_1 = arith.constant 0 : i32
    return %c0_i32, %c0_i32_0 : i32, i32
  }
}

</mosaic_0001>

<llo_original>
// kernel: tpu_custom_call.1
$region0: #{tpu_custom_call.1}
  #allocation0 [shape = 'u32[]', space=smem, size = 0x4, offset = 0x4, fixed_abs, tag = 'smem constant byte address 0x4 - core index']
  #allocation1 [shape = 'u32[144,128]{1,0:T(1,128)}', space=vmem, size = 0x12000, scoped, tag = 'internal scratch']
  %s0 = inlined_call_operand.hbm [shape: bf16[8,64], index: 0, kind: input, shape index: {}]
  %s1 = inlined_call_operand.hbm [shape: bf16[64,128], index: 1, kind: input, shape index: {}]
  %s2 = inlined_call_operand.vmem [shape: f32[1,128], index: 2, kind: input, shape index: {}]
  %s3 = inlined_call_operand.hbm [shape: f32[3,8,128], index: 3, kind: output, shape index: {0}]
  %s4 = inlined_call_operand.hbm [shape: f32[8,5], index: 4, kind: output, shape index: {1}]
  %s5 = inlined_call_operand.hbm [shape: s32[8,5], index: 5, kind: output, shape index: {2}]
  %6 = xla_tuple %s3, %s4, %s5
  %s7 = sld [smem:[#allocation0]]
  $region46: #{tpu_custom_call.1} parent=0
    _
  %s9 = ssub.s32 1, %s7
  %s10 = scalar_select 0, %s9, %s7
  $region1: #{tpu_custom_call.1} parent=0
    #allocation2 [shape = 'u8[2048]{0}', space=vmem, size = 0x800, scoped, tag = 'input window, operand 0, single buffered']
    #allocation3 [shape = 's32[1]{0}', space=sflag, size = 0x4, scoped, tag = 'scoped memory for tpu_custom_call.1']
    #allocation4 [shape = 's32[1]{0}', space=sflag, size = 0x4, scoped, tag = 'scoped memory for tpu_custom_call.1']
    #allocation5 [shape = 'u8[16384]{0}', space=vmem, size = 0x4000, scoped, tag = 'input window, operand 1, single buffered']
    #allocation6 [shape = 's32[1]{0}', space=sflag, size = 0x4, scoped, tag = 'scoped memory for tpu_custom_call.1']
    #allocation7 [shape = 'u8[12288]{0}', space=vmem, size = 0x3000, scoped, tag = 'output window, operand 0, single buffered']
    #allocation8 [shape = 'u8[4096]{0}', space=vmem, size = 0x1000, scoped, tag = 'output window, operand 1, single buffered']
    #allocation9 [shape = 's32[1]{0}', space=sflag, size = 0x4, scoped, tag = 'scoped memory for tpu_custom_call.1']
    #allocation10 [shape = 'u8[4096]{0}', space=vmem, size = 0x1000, scoped, tag = 'output window, operand 2, single buffered']
    %11 = vsyncpa [#allocation3], 0
    %12 = vsyncpa [#allocation6], 0
    %13 = vsyncpa [#allocation4], 0
    %14 = vsyncpa [#allocation9], 0
    // Predicated region
    $region2: #{tpu_custom_call.1} parent=1 // pred_check
      _
    $region3: #{tpu_custom_call.1} parent=1 // pred_check_branch
      %16 = sbr.rel (0) target = $region5
    $region4: #{tpu_custom_call.1} parent=1 // pred_region
      %s18 = ssub.s32 64, 64
      %19 = vsyncadd [#allocation3], %s18
      %s21 = sshll.u32 [#allocation2], 4
      %s22 = int_to_ptr.vmem [resolvable:$true] %s21
      %24 = dma.hbm_to_vmem [thread:$0]  %s0, 64, %s22, [#allocation3]
    $region5: #{tpu_custom_call.1} parent=1 // pred_fallthru
      _
    // Predicated region
    $region6: #{tpu_custom_call.1} parent=1 // pred_check
      _
    $region7: #{tpu_custom_call.1} parent=1 // pred_check_branch
      %26 = sbr.rel (0) target = $region9
    $region8: #{tpu_custom_call.1} parent=1 // pred_region
      %s28 = ssub.s32 512, 512
      %29 = vsyncadd [#allocation6], %s28
      %s30 = sshll.u32 [#allocation5], 4
      %s31 = int_to_ptr.vmem [resolvable:$true] %s30
      %36 = dma.hbm_to_vmem [thread:$0]  %s1, 512, %s31, [#allocation6], 64, 64, 4
    $region9: #{tpu_custom_call.1} parent=1 // pred_fallthru
      _
    // Predicated region
    $region10: #{tpu_custom_call.1} parent=1 // pred_check
      _
    $region11: #{tpu_custom_call.1} parent=1 // pred_check_branch
      %38 = sbr.rel (0) target = $region13
    $region12: #{tpu_custom_call.1} parent=1 // pred_region
      _
    $region13: #{tpu_custom_call.1} parent=1 // pred_fallthru
      _
    // Predicated region
    $region14: #{tpu_custom_call.1} parent=1 // pred_check
      _
    $region15: #{tpu_custom_call.1} parent=1 // pred_check_branch
      %40 = sbr.rel (0) target = $region17
    $region16: #{tpu_custom_call.1} parent=1 // pred_region
      %41 = dma.done [#allocation3], 64
    $region17: #{tpu_custom_call.1} parent=1 // pred_fallthru
      _
    // Predicated region
    $region18: #{tpu_custom_call.1} parent=1 // pred_check
      _
    $region19: #{tpu_custom_call.1} parent=1 // pred_check_branch
      %43 = sbr.rel (0) target = $region21
    $region20: #{tpu_custom_call.1} parent=1 // pred_region
      %44 = dma.done [#allocation6], 512
    $region21: #{tpu_custom_call.1} parent=1 // pred_fallthru
      _
    %v46 = vld [vmem:[#allocation2] sm:$0xf]
    %v47 = vld [vmem:[#allocation5] sm:$0xf]
    %v48 = vld [vmem:[#allocation5 + $0x4] sm:$0xf]
    %v49 = vld [vmem:[#allocation5 + $0x8] sm:$0xf]
    %v50 = vld [vmem:[#allocation5 + $0xc] sm:$0xf]
    %v51 = vld [vmem:[#allocation5 + $0x10] sm:$0xf]
    %v52 = vld [vmem:[#allocation5 + $0x14] sm:$0xf]
    %v53 = vld [vmem:[#allocation5 + $0x18] sm:$0xf]
    %v54 = vld [vmem:[#allocation5 + $0x1c] sm:$0xf]
    %v63 = vunpack.c.l.b16 %v47
    %v64 = vunpack.c.l.b16 %v48
    %v65 = vunpack.c.l.b16 %v49
    %v66 = vunpack.c.l.b16 %v50
    %v67 = vunpack.c.l.b16 %v51
    %v68 = vunpack.c.l.b16 %v52
    %v69 = vunpack.c.l.b16 %v53
    %v70 = vunpack.c.l.b16 %v54
    %v71 = vpack.c.b16 %v64, %v63
    %v72 = vpack.c.b16 %v66, %v65
    %v73 = vpack.c.b16 %v68, %v67
    %v74 = vpack.c.b16 %v70, %v69
    %vm79 = vcmask 523264
    %v81 = vsel %vm79, %v46, 0
    %83 = vmatprep.subr.bf16.mxu0 0
    %84 = vmatpush1.bf16.msra.mxu0 %v71
    %85 = vmatprep.subr.bf16.mxu0 0
    %86 = vmatpush1.bf16.msra.mxu0 %v72
    %87 = vmatprep.subr.bf16.mxu0 0
    %88 = vmatpush1.bf16.msra.mxu0 %v73
    %89 = vmatprep.subr.bf16.mxu0 0
    %90 = vmatpush1.bf16.msra.mxu0 %v74
    %91 = vmatprep.subr.bf16.mxu0 0
    %92 = vmatpush1.bf16.msra.mxu0 0
    %93 = vmatprep.subr.bf16.mxu0 0
    %94 = vmatpush1.bf16.msra.mxu0 0
    %95 = vmatprep.subr.bf16.mxu0 0
    %96 = vmatpush1.bf16.msra.mxu0 0
    %97 = vmatprep.subr.bf16.mxu0 0
    %98 = vmatpush1.bf16.msra.mxu0 0
    %99 = vmatprep.subr.bf16.mxu0 0
    %100 = vmatpush1.bf16.msra.mxu0 0
    %101 = vmatprep.subr.bf16.mxu0 0
    %102 = vmatpush1.bf16.msra.mxu0 0
    %103 = vmatprep.subr.bf16.mxu0 0
    %104 = vmatpush1.bf16.msra.mxu0 0
    %105 = vmatprep.subr.bf16.mxu0 0
    %106 = vmatpush1.bf16.msra.mxu0 0
    %107 = vmatprep.subr.bf16.mxu0 0
    %108 = vmatpush1.bf16.msra.mxu0 0
    %109 = vmatprep.subr.bf16.mxu0 0
    %110 = vmatpush1.bf16.msra.mxu0 0
    %111 = vmatprep.subr.bf16.mxu0 0
    %112 = vmatpush1.bf16.msra.mxu0 0
    %113 = vmatprep.subr.bf16.mxu0 0
    %114 = vmatpush1.bf16.msra.mxu0 0
    %115 = vmatprep.mubr.bf16.mxu0 0
    %116 = vmatmul.mubr.bf16.gmra.mrb[0].mxu0 %v81
    %v117 = vpop.f32.mrb[0].mxu0
    %v118 = vadd.f32 0.0, %v117
    %v119 = vpop.f32.mrb[0].mxu0
    %v120 = vpop.f32.mrb[0].mxu0
    %v121 = vpop.f32.mrb[0].mxu0
    %122 = vdwg.mxu0
    %v123 = vld [vmem:[%s2] sm:$0x1]
    %v125 = vlaneseq
    %v126 = vshrl.u32 %v125, 7
    %v127 = vsub.s32 0, %v126
    %v128 = vrot.slane %v123, %v127
    %v130 = vlaneseq
    %v131 = vand.u32 %v130, 127
    %v132 = vcvt.s32.f32 %v131
    %v133 = vmul.f32 %v132, 128.0
    %v134 = vadd.f32 %v133, %v128
    %135 = vmax.xlane.f32.xlu0 %v118
    %v136 = vpop.xlane.xlu0 %135
    %vm137 = vcmp.eq.f32.partialorder %v118, %v136
    %v138 = vsel %vm137, %v134, 16384.0
    %139 = vmin.xlane.f32.xlu0 %v138
    %v140 = vpop.xlane.xlu0 %139
    %v141 = vrcp.pop 128.0
    %v142 = vmul.f32 %v140, %v141
    %v143 = vfloor.f32 %v142
    %v144 = vmul.f32 %v143, 128.0
    %v145 = vsub.f32 %v140, %v144
    %vm146 = vcmp.eq.f32.partialorder %v132, %v143
    %v147 = vsel %vm146, -inf, %v118
    %vm148 = vcmp.eq.s32.totalorder %v131, 0
    %v149 = vsel %vm148, %v136, 0.0
    %v150 = vsel %vm148, %v145, 0.0
    %151 = vmax.xlane.f32.xlu0 %v147
    %v152 = vpop.xlane.xlu0 %151
    %vm153 = vcmp.eq.f32.partialorder %v147, %v152
    %v154 = vsel %vm153, %v134, 16384.0
    %155 = vmin.xlane.f32.xlu0 %v154
    %v156 = vpop.xlane.xlu0 %155
    %v157 = vmul.f32 %v156, %v141
    %v158 = vfloor.f32 %v157
    %v159 = vmul.f32 %v158, 128.0
    %v160 = vsub.f32 %v156, %v159
    %vm161 = vcmp.eq.f32.partialorder %v132, %v158
    %v162 = vsel %vm161, -inf, %v147
    %vm163 = vcmp.eq.s32.totalorder %v131, 1
    %v164 = vsel %vm163, %v152, %v149
    %v165 = vsel %vm163, %v160, %v150
    %166 = vmax.xlane.f32.xlu0 %v162
    %v167 = vpop.xlane.xlu0 %166
    %vm168 = vcmp.eq.f32.partialorder %v162, %v167
    %v169 = vsel %vm168, %v134, 16384.0
    %170 = vmin.xlane.f32.xlu0 %v169
    %v171 = vpop.xlane.xlu0 %170
    %v172 = vmul.f32 %v171, %v141
    %v173 = vfloor.f32 %v172
    %v174 = vmul.f32 %v173, 128.0
    %v175 = vsub.f32 %v171, %v174
    %vm176 = vcmp.eq.f32.partialorder %v132, %v173
    %v177 = vsel %vm176, -inf, %v162
    %vm178 = vcmp.eq.s32.totalorder %v131, 2
    %v179 = vsel %vm178, %v167, %v164
    %v180 = vsel %vm178, %v175, %v165
    %181 = vmax.xlane.f32.xlu0 %v177
    %v182 = vpop.xlane.xlu0 %181
    %vm183 = vcmp.eq.f32.partialorder %v177, %v182
    %v184 = vsel %vm183, %v134, 16384.0
    %185 = vmin.xlane.f32.xlu0 %v184
    %v186 = vpop.xlane.xlu0 %185
    %v187 = vmul.f32 %v186, %v141
    %v188 = vfloor.f32 %v187
    %v189 = vmul.f32 %v188, 128.0
    %v190 = vsub.f32 %v186, %v189
    %vm191 = vcmp.eq.f32.partialorder %v132, %v188
    %v192 = vsel %vm191, -inf, %v177
    %vm193 = vcmp.eq.s32.totalorder %v131, 3
    %v194 = vsel %vm193, %v182, %v179
    %v195 = vsel %vm193, %v190, %v180
    %196 = vmax.xlane.f32.xlu0 %v192
    %v197 = vpop.xlane.xlu0 %196
    %vm198 = vcmp.eq.f32.partialorder %v192, %v197
    %v199 = vsel %vm198, %v134, 16384.0
    %200 = vmin.xlane.f32.xlu0 %v199
    %v201 = vpop.xlane.xlu0 %200
    %v202 = vmul.f32 %v201, %v141
    %v203 = vfloor.f32 %v202
    %v204 = vmul.f32 %v203, 128.0
    %v205 = vsub.f32 %v201, %v204
    %vm206 = vcmp.eq.s32.totalorder %v131, 4
    %v207 = vsel %vm206, %v197, %v194
    %v208 = vsel %vm206, %v205, %v195
    %vm209 = vcmask 39936
    %210 = vst.msk [vmem:[#allocation8] sm:$0xff] %vm209, %v207
    %v211 = vcvt.f32.s32.to.zero.pseudo %v208
    %212 = vst.msk [vmem:[#allocation10] sm:$0xff] %vm209, %v211
    %v213 = vsub.f32 %v207, %v136
    %v214 = vmul.f32 %v213, 14.285714
    %v215 = vmul.f32 %v214, 1.442695
    %v216 = vpow.pop %v215
    %v217 = vsel %vm209, %v216, 0.0
    %218 = vadd.xlane.f32.xlu0 %v217
    %v219 = vpop.xlane.xlu0 %218
    %v220 = vrcp.pop %v219
    %v221 = vmul.f32 %v216, %v220
    %vm222 = vcmp.eq.f32.partialorder %v132, %v145
    %v223 = vsel %vm222, 1, 0
    %v224 = vcvt.s32.f32 %v223
    %226 = vset.pattern.permute.xlu0 0
    %227 = vperm.xlu0 %226, %v221
    %v228 = vpop.permute.xlu0 %227
    %v230 = vmul.f32 %v228, %v224
    %v231 = vadd.f32 %v230, 0.0
    %232 = vst [vmem:[#allocation7] sm:$0xff] %v231
    %vm233 = vcmp.eq.f32.partialorder %v132, %v160
    %v234 = vsel %vm233, 1, 0
    %v235 = vcvt.s32.f32 %v234
    %236 = vset.pattern.permute.xlu0 1
    %237 = vperm.xlu0 %236, %v221
    %v238 = vpop.permute.xlu0 %237
    %v240 = vmul.f32 %v238, %v235
    %v241 = vadd.f32 %v231, %v240
    %vm242 = vcmp.eq.f32.partialorder %v132, %v175
    %v243 = vsel %vm242, 1, 0
    %v244 = vcvt.s32.f32 %v243
    %245 = vset.pattern.permute.xlu0 2
    %246 = vperm.xlu0 %245, %v221
    %v247 = vpop.permute.xlu0 %246
    %v249 = vmul.f32 %v247, %v244
    %v250 = vadd.f32 %v241, %v249
    %s251 = scalar_lea.vmem [#allocation7], 8
    %252 = vst [vmem:[%s251] sm:$0xff] %v250
    %vm253 = vcmp.eq.f32.partialorder %v132, %v190
    %v254 = vsel %vm253, 1, 0
    %v255 = vcvt.s32.f32 %v254
    %256 = vset.pattern.permute.xlu0 3
    %257 = vperm.xlu0 %256, %v221
    %v258 = vpop.permute.xlu0 %257
    %v260 = vmul.f32 %v258, %v255
    %v261 = vadd.f32 %v250, %v260
    %vm262 = vcmp.eq.f32.partialorder %v132, %v205
    %v263 = vsel %vm262, 1, 0
    %v264 = vcvt.s32.f32 %v263
    %265 = vset.pattern.permute.xlu0 4
    %266 = vperm.xlu0 %265, %v221
    %v267 = vpop.permute.xlu0 %266
    %v269 = vmul.f32 %v267, %v264
    %v270 = vadd.f32 %v261, %v269
    %s271 = scalar_lea.vmem [#allocation7], 16
    %272 = vst [vmem:[%s271] sm:$0xff] %v270
    // Predicated region
    $region22: #{tpu_custom_call.1} parent=1 // pred_check
      _
    $region23: #{tpu_custom_call.1} parent=1 // pred_check_branch
      %274 = sbr.rel (0) target = $region25
    $region24: #{tpu_custom_call.1} parent=1 // pred_region
      %s276 = ssub.s32 384, 384
      %277 = vsyncadd [#allocation4], %s276
      %s278 = sshll.u32 [#allocation7], 4
      %s279 = int_to_ptr.vmem [resolvable:$true] %s278
      %284 = dma.vmem_to_hbm [thread:$0]  %s279, 384, %s3, [#allocation4], 128, 128, 8
    $region25: #{tpu_custom_call.1} parent=1 // pred_fallthru
      _
    // Predicated region
    $region26: #{tpu_custom_call.1} parent=1 // pred_check
      _
    $region27: #{tpu_custom_call.1} parent=1 // pred_check_branch
      %286 = sbr.rel (0) target = $region29
    $region28: #{tpu_custom_call.1} parent=1 // pred_region
      %s288 = ssub.s32 128, 128
      %289 = vsyncadd [#allocation9], %s288
      %s291 = sshll.u32 [#allocation8], 4
      %s292 = int_to_ptr.vmem [resolvable:$true] %s291
      %294 = dma.vmem_to_hbm [thread:$0]  %s292, 128, %s4, [#allocation9]
    $region29: #{tpu_custom_call.1} parent=1 // pred_fallthru
      _
    // Predicated region
    $region30: #{tpu_custom_call.1} parent=1 // pred_check
      _
    $region31: #{tpu_custom_call.1} parent=1 // pred_check_branch
      %296 = sbr.rel (0) target = $region33
    $region32: #{tpu_custom_call.1} parent=1 // pred_region
      %s298 = ssub.s32 128, 128
      %299 = vsyncadd [#allocation9], %s298
      %s301 = sshll.u32 [#allocation10], 4
      %s302 = int_to_ptr.vmem [resolvable:$true] %s301
      %304 = dma.vmem_to_hbm [thread:$0]  %s302, 128, %s5, [#allocation9]
    $region33: #{tpu_custom_call.1} parent=1 // pred_fallthru
      _
    // Predicated region
    $region34: #{tpu_custom_call.1} parent=1 // pred_check
      _
    $region35: #{tpu_custom_call.1} parent=1 // pred_check_branch
      %306 = sbr.rel (0) target = $region37
    $region36: #{tpu_custom_call.1} parent=1 // pred_region
      %307 = dma.done [#allocation4], 384
    $region37: #{tpu_custom_call.1} parent=1 // pred_fallthru
      _
    // Predicated region
    $region38: #{tpu_custom_call.1} parent=1 // pred_check
      _
    $region39: #{tpu_custom_call.1} parent=1 // pred_check_branch
      %309 = sbr.rel (0) target = $region41
    $region40: #{tpu_custom_call.1} parent=1 // pred_region
      %310 = dma.done [#allocation9], 128
    $region41: #{tpu_custom_call.1} parent=1 // pred_fallthru
      _
    // Predicated region
    $region42: #{tpu_custom_call.1} parent=1 // pred_check
      _
    $region43: #{tpu_custom_call.1} parent=1 // pred_check_branch
      %312 = sbr.rel (0) target = $region45
    $region44: #{tpu_custom_call.1} parent=1 // pred_region
      %313 = dma.done [#allocation9], 128
    $region45: #{tpu_custom_call.1} parent=1 // pred_fallthru
      _
    %314 = vsyncpa [#allocation3], 1
    %315 = vsyncpa [#allocation6], 1
    %316 = vsyncpa [#allocation4], 1
    %317 = vsyncpa [#allocation9], 1

</llo_original>
